<compile_context>
chip_gen: v6e
topology: v6e:2x2x1
jax: 0.10.0
libtpu: 0.0.40
codegen_flags: <defaults>
</compile_context>

<pallas_src>
import itertools

import numpy as np
import jax
import jax.numpy as jnp
from jax.experimental import pallas as pl
from jax.experimental.pallas import tpu as pltpu


# ----------------------------------------------------------------------------
# Host-side preprocessing (equivalent of qhull.Delaunay + find_simplex(return_c))
# TODO(synk): qhull / Delaunay triangulation has no Pallas equivalent; it is the
# explicitly non-differentiable CPU phase of the original module and stays in NumPy.
# ----------------------------------------------------------------------------
def _delaunay_simplices(pts):
    """Brute-force Delaunay: keep triangles whose circumcircle is empty."""
    n = pts.shape[0]
    simplices = []
    for combo in itertools.combinations(range(n), 3):
        a, b, c = pts[combo[0]], pts[combo[1]], pts[combo[2]]
        area2 = (b[0] - a[0]) * (c[1] - a[1]) - (b[1] - a[1]) * (c[0] - a[0])
        if abs(area2) < 1e-9:
            continue
        ax, ay = a; bx, by = b; cx, cy = c
        d = 2.0 * (ax * (by - cy) + bx * (cy - ay) + cx * (ay - by))
        ux = ((ax * ax + ay * ay) * (by - cy) + (bx * bx + by * by) * (cy - ay)
              + (cx * cx + cy * cy) * (ay - by)) / d
        uy = ((ax * ax + ay * ay) * (cx - bx) + (bx * bx + by * by) * (ax - cx)
              + (cx * cx + cy * cy) * (bx - ax)) / d
        r2 = (ax - ux) ** 2 + (ay - uy) ** 2
        ok = True
        for k in range(n):
            if k in combo:
                continue
            if (pts[k, 0] - ux) ** 2 + (pts[k, 1] - uy) ** 2 < r2 - 1e-9:
                ok = False
                break
        if ok:
            simplices.append(combo)
    return np.asarray(simplices, dtype=np.int64)


def _find_simplex_and_weights(coord, pts, simplices):
    """For each grid coord, find a containing simplex + barycentric weights."""
    P = coord.shape[0]
    isimplex = np.full((P,), -1, dtype=np.int64)
    weights = np.zeros((P, 3), dtype=np.float64)
    bary0 = None
    for s in range(simplices.shape[0]):
        ia, ib, ic = simplices[s]
        a, b, c = pts[ia], pts[ib], pts[ic]
        T = np.array([[a[0] - c[0], b[0] - c[0]],
                      [a[1] - c[1], b[1] - c[1]]], dtype=np.float64)
        Tinv = np.linalg.inv(T)
        rel = coord.astype(np.float64) - c[None, :]
        lam12 = rel @ Tinv.T
        lam3 = 1.0 - lam12.sum(axis=1)
        bary = np.concatenate([lam12, lam3[:, None]], axis=1)
        if s == 0:
            bary0 = bary
        inside = (bary >= -1e-7).all(axis=1) & (isimplex == -1)
        isimplex[inside] = s
        weights[inside] = bary[inside]
    missing = isimplex == -1
    if missing.any():
        # TODO(synk): the original module only clamps isimplex to 0 and keeps whatever
        # barycentric coords qhull returned (undefined for outside points); we use the
        # coords w.r.t. simplex 0 as a deterministic stand-in.  With add_corner=True
        # the grid is fully covered and this branch never triggers.
        print("WARNING: {} Points outside the triangulation get the value -1, "
              "multiplied by 0\n".format(int(missing.sum())))
        isimplex[missing] = 0
        weights[missing] = bary0[missing]
    return isimplex, weights


def interp2d_preprocess(points, values, h, w, add_corner=True):
    """Mirrors Interp2D.__init__ + the CPU part of forward().

    Returns tri_map (P, 3) int32, weights (P, 3) f32, values_all (N, vdim) f32.
    """
    points = np.asarray(points, dtype=np.float64)
    values = np.asarray(values, dtype=np.float32)
    if add_corner:
        corners = np.array([[0, 0], [0, w - 1], [h - 1, 0], [h - 1, w - 1]],
                           dtype=np.float64)
        points = np.concatenate([points, corners], axis=0)
        values = np.concatenate(
            [values, np.zeros((4, values.shape[1]), dtype=np.float32)], axis=0)

    # grid coords, same construction as the module (row-major (row, col) pairs)
    row_coord = np.arange(h).repeat([w] * h).reshape([h, w])
    col_coord = np.arange(w).repeat([h] * w).reshape([w, h]).T
    coord = np.stack([row_coord, col_coord]).transpose([1, 2, 0]).reshape([-1, 2])

    simplices = _delaunay_simplices(points)
    isimplex, weights = _find_simplex_and_weights(coord, points, simplices)
    tri_map = simplices[isimplex]                    # (P, 3) corner indices
    return (tri_map.astype(np.int32),
            weights.astype(np.float32),
            values.astype(np.float32))


# ----------------------------------------------------------------------------
# Tile sizing / host-side packing
# ----------------------------------------------------------------------------
def _vmem_budget_bytes(frac=0.75):
    """Generation-aware VMEM budget (v5e/v6e: 128 MiB, v7x: 64 MiB physical)."""
    try:
        cap = int(pltpu.get_tpu_info().vmem_capacity_bytes)
        return int(cap * frac)
    except Exception:
        return 48 << 20          # safe on every generation (below v7x's 64 MiB)


def build_gather_inputs(tri_map, weights, values_all, h, w,
                        compute_dtype=jnp.bfloat16, vmem_budget_bytes=None):
    """Static host-side packing: dense, lane-dense gather matrix + transposed values.

    The triangulation (tri_map / weights) is static, so the sparse per-pixel gather
    is scattered once into a dense (N_pad, P_pad) matrix with pixels on the lane
    axis; the kernel then reduces to a plain tiled matmul.

    Returns (vals_t f32 (vdim_pad, N_pad), gw_t f32 (N_pad, P_pad), tile_p).
    """
    P = h * w
    N, vdim = values_all.shape
    gw_bytes = jnp.dtype(compute_dtype).itemsize
    sub = 16 if gw_bytes == 2 else 8                 # sublane tile of compute dtype
    vdim_pad = -(-vdim // sub) * sub
    # Contraction dim: 128-align (review: 256-align doubled gw traffic for no gain).
    n_pad = max(128, -(-N // 128) * 128)
    p128 = -(-P // 128) * 128

    if vmem_budget_bytes is None:
        vmem_budget_bytes = _vmem_budget_bytes()

    # Pixel (lane) tile size, derived from the VMEM budget instead of a fixed 512:
    #   per pixel column: double-buffered gw tile + double-buffered f32 out tile.
    # Additionally cap so one gw DMA buffer is ~8 MiB -- large enough that the
    # ~0.35 us per-grid-step overhead is negligible against the DMA itself.
    fixed = 2 * vdim_pad * n_pad * gw_bytes          # resident vals^T (double-buffered)
    headroom = 4 << 20
    per_col = 2 * n_pad * gw_bytes + 2 * vdim_pad * 4
    tile_cap_budget = max(128, (vmem_budget_bytes - fixed - headroom) // per_col)
    tile_cap_dma = max(128, (8 << 20) // (n_pad * gw_bytes))
    tp = min(int(tile_cap_budget), int(tile_cap_dma), p128)
    tp = max(128, (tp // 128) * 128)

    # Keep >=4 tiles when possible (>=2 per v7x TensorCore with a "parallel" pixel
    # axis so each core still pipelines), else >=2.
    if p128 // tp < 4 and p128 >= 4 * 128:
        tp = max(128, ((p128 // 4) // 128) * 128)
    elif p128 // tp < 2 and p128 >= 2 * 128:
        tp = max(128, ((p128 // 2) // 128) * 128)
    p_pad = -(-P // tp) * tp

    # Dense gather/weight matrix: gw_t[n, p] = sum of barycentric weights of corner n
    # for pixel p (np.add.at handles repeated corner indices).  Padded rows/cols = 0.
    gw_t = np.zeros((n_pad, p_pad), np.float32)
    cols = np.arange(P, dtype=np.int64)
    for i in range(3):
        np.add.at(gw_t, (tri_map[:, i].astype(np.int64), cols), weights[:, i])

    vals_t = np.zeros((vdim_pad, n_pad), np.float32)
    vals_t[:vdim, :N] = values_all.T
    return vals_t, gw_t, tp


# ----------------------------------------------------------------------------
# Pallas kernel: transposed output tile  out^T = vals^T @ gw^T   (pure MXU)
# ----------------------------------------------------------------------------
def _interp_kernel(vals_t_ref, gw_ref, out_ref):
    # (vdim_pad, TP) = (vdim_pad, N_pad) @ (N_pad, TP); TP is a multiple of 128 so
    # stores are lane-dense (no masked vst).  bf16 inputs, f32 MXU accumulation.
    out_ref[...] = jnp.dot(vals_t_ref[...], gw_ref[...],
                           preferred_element_type=jnp.float32).astype(out_ref.dtype)


def interp2d_pallas(vals_t, gw_t, h, w, vdim, tile_p,
                    compute_dtype=jnp.bfloat16, vmem_budget_bytes=None):
    """Device hot path of Interp2D.forward.  Returns (vdim, h, w) float32."""
    vdim_pad, n_pad = vals_t.shape
    n_pad2, p_pad = gw_t.shape
    assert n_pad == n_pad2 and p_pad % tile_p == 0
    grid = p_pad // tile_p

    gw_bytes = jnp.dtype(compute_dtype).itemsize
    if vmem_budget_bytes is None:
        vmem_budget_bytes = _vmem_budget_bytes()
    # Actual double-buffered usage (gw tile, out tile, resident vals^T) + headroom.
    usage = (2 * n_pad * tile_p * gw_bytes
             + 2 * vdim_pad * tile_p * 4
             + 2 * vdim_pad * n_pad * gw_bytes
             + (4 << 20))
    # Never clamp the limit below the requirement (generation-aware cap otherwise).
    vmem_limit = int(max(vmem_budget_bytes, usage))

    vals_dev = jnp.asarray(vals_t).astype(compute_dtype)
    gw_dev = jnp.asarray(gw_t).astype(compute_dtype)

    out_t = pl.pallas_call(
        _interp_kernel,
        out_shape=jax.ShapeDtypeStruct((vdim_pad, p_pad), jnp.float32),
        grid_spec=pltpu.PrefetchScalarGridSpec(
            num_scalar_prefetch=0,
            grid=(grid,),
            in_specs=[
                pl.BlockSpec((vdim_pad, n_pad), lambda i: (0, 0)),   # values^T (resident)
                pl.BlockSpec((n_pad, tile_p), lambda i: (0, i)),     # gather matrix tile
                # TODO(synk): on v5e consider pipeline_mode=pl.Buffered(3) on the gw
                # spec if profiling still shows exposed DMA.
            ],
            out_specs=pl.BlockSpec((vdim_pad, tile_p), lambda i: (0, i)),
        ),
        compiler_params=pltpu.CompilerParams(
            dimension_semantics=("parallel",),   # v7x: shard pixel tiles over 2 TCs
            vmem_limit_bytes=vmem_limit,
        ),
    )(vals_dev, gw_dev)

    # Output is already (vdim_pad, P_pad): crop only what is actually padded
    # (the lane crop disappears for 128-aligned P), then reshape - no HBM transpose.
    out = out_t
    if p_pad != h * w:
        out = out[:, :h * w]
    if vdim_pad != vdim:
        out = out[:vdim]
    return out.reshape(vdim, h, w)


# ----------------------------------------------------------------------------
# Demo / correctness check
# ----------------------------------------------------------------------------
if __name__ == "__main__":
    h, w = 16, 16
    num_pts, vdim = 12, 4

    key = jax.random.PRNGKey(0)
    k_pts, k_vals = jax.random.split(key)

    # unique integer interior points (like the module's long() points)
    interior = np.stack(np.meshgrid(np.arange(1, h - 1), np.arange(1, w - 1),
                                    indexing="ij"), axis=-1).reshape(-1, 2)
    sel = np.asarray(jax.random.choice(k_pts, interior.shape[0], (num_pts,),
                                       replace=False))
    points = interior[sel].astype(np.float64)                       # (12, 2)
    values = np.asarray(jax.random.normal(k_vals, (num_pts, vdim)),
                        dtype=np.float32)                           # (12, 4)

    # host preprocessing (Delaunay + find_simplex), add_corner=True as in the module
    tri_map, weights, values_all = interp2d_preprocess(points, values, h, w,
                                                       add_corner=True)
    vals_t, gw_t, tile_p = build_gather_inputs(tri_map, weights, values_all, h, w,
                                               compute_dtype=jnp.bfloat16)

    # Pallas kernel
    out = interp2d_pallas(vals_t, gw_t, h, w, vdim, tile_p,
                          compute_dtype=jnp.bfloat16)
    out = jax.block_until_ready(out)
    assert out.shape == (vdim, h, w)

    # pure NumPy (f32) reference of the device hot path
    value_corr = values_all[tri_map]                   # (P, 3, vdim)
    ref = (value_corr * weights[:, :, None]).sum(axis=1)
    ref = ref.reshape(h, w, vdim).transpose(2, 0, 1)

    # bf16-streamed operands -> relaxed tolerance (input rounding ~2^-9 relative).
    np.testing.assert_allclose(np.asarray(out), ref, rtol=2e-2, atol=3e-2)
    print("KERNEL_OK")
</pallas_src>

<mosaic_0001>
module attributes {stable_mosaic.version = 11 : i64} {
  func.func @_interp_kernel(%arg0: i32, %arg1: memref<16x128xbf16, #tpu.memory_space<vmem>>, %arg2: memref<128x128xbf16, #tpu.memory_space<vmem>>, %arg3: memref<16x128xf32, #tpu.memory_space<vmem>>) attributes {dimension_semantics = [#tpu.dimension_semantics<parallel>], iteration_bounds = array<i64: 2>, scalar_prefetch = 0 : i64, scratch_operands = 0 : i64, tpu.core_type = #tpu.core_type<tc>, window_params = [{pipeline_mode = #tpu.pipeline_mode<synchronous>, transform_indices = @transform_0, window_bounds = array<i64: 16, 128>}, {transform_indices = @transform_1, window_bounds = array<i64: 128, 128>}, {transform_indices = @transform_2, window_bounds = array<i64: 16, 128>}]} {
    %c0 = arith.constant 0 : index
    %c0_0 = arith.constant 0 : index
    %0 = vector.load %arg1[%c0, %c0_0] : memref<16x128xbf16, #tpu.memory_space<vmem>>, vector<16x128xbf16>
    %c0_1 = arith.constant 0 : index
    %c0_2 = arith.constant 0 : index
    %1 = vector.load %arg2[%c0_1, %c0_2] : memref<128x128xbf16, #tpu.memory_space<vmem>>, vector<128x128xbf16>
    %cst = arith.constant dense<0.000000e+00> : vector<16x128xf32>
    %2 = tpu.matmul %0, %1, %cst {dimension_numbers = #tpu.dot_dimension_numbers<[1], [0], [0], [1], [0, 0, 1, 1], [], []>} : vector<16x128xbf16>, vector<128x128xbf16>, vector<16x128xf32> -> vector<16x128xf32>
    %c0_3 = arith.constant 0 : index
    %c0_4 = arith.constant 0 : index
    %3 = vector.load %arg3[%c0_3, %c0_4] : memref<16x128xf32, #tpu.memory_space<vmem>>, vector<16x128xf32>
    tpu.vector_store %arg3[%c0_3, %c0_4], %2 {strides = array<i32>} : memref<16x128xf32, #tpu.memory_space<vmem>>, vector<16x128xf32>,
    return
  }
  func.func @transform_0(%arg0: i32) -> (i32, i32) {
    %c0_i32 = arith.constant 0 : i32
    %c0_i32_0 = arith.constant 0 : i32
    %c0_i32_1 = arith.constant 0 : i32
    return %c0_i32, %c0_i32_0 : i32, i32
  }
  func.func @transform_1(%arg0: i32) -> (i32, i32) {
    %c0_i32 = arith.constant 0 : i32
    %c0_i32_0 = arith.constant 0 : i32
    return %c0_i32, %arg0 : i32, i32
  }
  func.func @transform_2(%arg0: i32) -> (i32, i32) {
    %c0_i32 = arith.constant 0 : i32
    %c0_i32_0 = arith.constant 0 : i32
    return %c0_i32, %arg0 : i32, i32
  }
}

</mosaic_0001>

<llo_original>
// kernel: tpu_custom_call.1
$region0: #{tpu_custom_call.1}
  #allocation0 [shape = 'u32[]', space=smem, size = 0x4, offset = 0x4, fixed_abs, tag = 'smem constant byte address 0x4 - core index']
  #allocation1 [shape = 'u32[144,128]{1,0:T(1,128)}', space=vmem, size = 0x12000, scoped, tag = 'internal scratch']
  %s0 = inlined_call_operand.hbm [shape: bf16[16,128], index: 0, kind: input, shape index: {}]
  %s1 = inlined_call_operand.hbm [shape: bf16[128,256], index: 1, kind: input, shape index: {}]
  %s2 = inlined_call_operand.hbm [shape: f32[16,256], index: 2, kind: output, shape index: {}]
  %s3 = sld [smem:[#allocation0]]
  $region49: #{tpu_custom_call.1} parent=0
    _
  %s5 = ssub.s32 1, %s3
  %s6 = scalar_select 0, %s5, %s3
  $region1: #{tpu_custom_call.1} parent=0
    #allocation2 [shape = 'u8[4096]{0}', space=vmem, size = 0x1000, scoped, tag = 'input window, operand 0, single buffered']
    #allocation3 [shape = 's32[2]{0}', space=sflag, size = 0x8, scoped, tag = 'scoped memory for tpu_custom_call.1']
    #allocation4 [shape = 's32[2]{0}', space=sflag, size = 0x8, scoped, tag = 'scoped memory for tpu_custom_call.1']
    #allocation5 [shape = 'u8[65536]{0}', space=vmem, size = 0x10000, scoped, tag = 'input window, operand 1']
    #allocation6 [shape = 's32[2]{0}', space=sflag, size = 0x8, scoped, tag = 'scoped memory for tpu_custom_call.1']
    #allocation7 [shape = 'u8[16384]{0}', space=vmem, size = 0x4000, scoped, tag = 'output window, operand 0']
    %7 = vsyncpa [#allocation3], 0
    %8 = vsyncpa [#allocation6], 0
    %s9 = scalar_lea.sflag [#allocation6], 1
    %10 = vsyncpa %s9, 0
    %11 = vsyncpa [#allocation4], 0
    %s12 = scalar_lea.sflag [#allocation4], 1
    %13 = vsyncpa %s12, 0
    loop: start=0, step=1, limit=4
    $region2: #{tpu_custom_call.1} parent=1 // loop_pre_header
      _
    $region3: #{tpu_custom_call.1} parent=1 // loop_header
      %s15 = sphi 0, %s19
      %p16 = scmp.ge.s32.totalorder %s15, 4
      %s23 = sphi 0, %s23
      %s25 = sphi 0, %s23
      %s26 = sphi 0, %s25
      %s40 = sphi 0, %s26
      %s46 = sphi 0, %s48
      %s49 = sphi 0, %s46
      %s50 = sphi 0, %s49
      %s66 = sphi 0, %s50
      %s72 = sphi 0, %s74
      %s75 = sphi 0, %s72
      %s76 = sphi 0, %s75
      %s92 = sphi 0, %s76
    $region4: #{tpu_custom_call.1} parent=1 // loop_header_branch
      %18 = sbr.rel (%p16) target = $region8
    $region5: #{tpu_custom_call.1} parent=1 // loop_body
      %s20 = ssub.s32 %s15, 1
      %s21 = ssub.s32 %s15, 2
      %s22 = sadd.s32 %s15, 1
      %s24 = sadd.s32 %s23, 1
      %p27 = scmp.eq.s32.totalorder %s15, 1
      %p28 = scmp.ne.s32.totalorder %s23, %s25
      %p29 = scmp.eq.s32.totalorder %s15, 0
      %p30 = por %p28, %p29
      %p31 = scmp.ne.s32.totalorder %s23, %s25
      %p32 = scmp.eq.s32.totalorder %s20, 1
      %p33 = por %p31, %p32
      %p34 = scmp.ne.s32.totalorder %s25, %s26
      %p35 = scmp.eq.s32.totalorder %s20, 0
      %p36 = por %p34, %p35
      %p37 = scmp.ne.s32.totalorder %s25, %s26
      %p38 = scmp.eq.s32.totalorder %s21, 1
      %p39 = por %p37, %p38
      %p41 = scmp.ne.s32.totalorder %s26, %s40
      %p42 = scmp.eq.s32.totalorder %s21, 0
      %p43 = por %p41, %p42
      %s44 = ssub.s32 %s15, %s22
      %p45 = scmp.eq.s32.totalorder %s44, 0
      %s47 = sadd.s32 %s46, 1
      %s48 = scalar_select %p45, %s46, %s47
      %p51 = pneg %p45
      %p52 = scmp.eq.s32.totalorder %s15, 1
      %p53 = por %p51, %p52
      %p54 = scmp.ne.s32.totalorder %s46, %s49
      %p55 = scmp.eq.s32.totalorder %s15, 0
      %p56 = por %p54, %p55
      %p57 = scmp.ne.s32.totalorder %s46, %s49
      %p58 = scmp.eq.s32.totalorder %s20, 1
      %p59 = por %p57, %p58
      %p60 = scmp.ne.s32.totalorder %s49, %s50
      %p61 = scmp.eq.s32.totalorder %s20, 0
      %p62 = por %p60, %p61
      %p63 = scmp.ne.s32.totalorder %s49, %s50
      %p64 = scmp.eq.s32.totalorder %s21, 1
      %p65 = por %p63, %p64
      %p67 = scmp.ne.s32.totalorder %s50, %s66
      %p68 = scmp.eq.s32.totalorder %s21, 0
      %p69 = por %p67, %p68
      %s70 = ssub.s32 %s15, %s22
      %p71 = scmp.eq.s32.totalorder %s70, 0
      %s73 = sadd.s32 %s72, 1
      %s74 = scalar_select %p71, %s72, %s73
      %p77 = pneg %p71
      %p78 = scmp.eq.s32.totalorder %s15, 1
      %p79 = por %p77, %p78
      %p80 = scmp.ne.s32.totalorder %s72, %s75
      %p81 = scmp.eq.s32.totalorder %s15, 0
      %p82 = por %p80, %p81
      %p83 = scmp.ne.s32.totalorder %s72, %s75
      %p84 = scmp.eq.s32.totalorder %s20, 1
      %p85 = por %p83, %p84
      %p86 = scmp.ne.s32.totalorder %s75, %s76
      %p87 = scmp.eq.s32.totalorder %s20, 0
      %p88 = por %p86, %p87
      %p89 = scmp.ne.s32.totalorder %s75, %s76
      %p90 = scmp.eq.s32.totalorder %s21, 1
      %p91 = por %p89, %p90
      %p93 = scmp.ne.s32.totalorder %s76, %s92
      %p94 = scmp.eq.s32.totalorder %s21, 0
      %p95 = por %p93, %p94
      %p96 = scmp.le.s32.totalorder 1, %s15
      %p97 = scmp.lt.s32.totalorder %s15, 3
      %p98 = pnand %p96, %p97
      %p99 = pneg %p98
      // Predicated region
      $region9: #{tpu_custom_call.1} parent=5 // pred_check
        _
      $region10: #{tpu_custom_call.1} parent=5 // pred_check_branch
        %101 = sbr.rel (%p98) target = $region12
      $region11: #{tpu_custom_call.1} parent=5 // pred_region
        %s102 = ssub.s32 %s15, 1
        // Predicated region
        $region13: #{tpu_custom_call.1} parent=11 // pred_check
          %p103 = pneg %p36
        $region14: #{tpu_custom_call.1} parent=11 // pred_check_branch
          %105 = sbr.rel (%p103) target = $region16
        $region15: #{tpu_custom_call.1} parent=11 // pred_region
          %s107 = ssub.s32 128, 128
          %108 = vsyncadd [#allocation3], %s107
          %s109 = sshll.u32 [#allocation2], 4
          %s110 = int_to_ptr.vmem [resolvable:$true] %s109
          %115 = dma.hbm_to_vmem [thread:$0]  %s0, 128, %s110, [#allocation3], 64, 64, 4
        $region16: #{tpu_custom_call.1} parent=11 // pred_fallthru
          _
      $region12: #{tpu_custom_call.1} parent=5 // pred_fallthru
        _
      %p116 = scmp.lt.s32.totalorder %s15, 2
      // Predicated region
      $region17: #{tpu_custom_call.1} parent=5 // pred_check
        %p117 = pneg %p116
      $region18: #{tpu_custom_call.1} parent=5 // pred_check_branch
        %119 = sbr.rel (%p117) target = $region20
      $region19: #{tpu_custom_call.1} parent=5 // pred_region
        // Predicated region
        $region21: #{tpu_custom_call.1} parent=19 // pred_check
          %p120 = pneg %p56
        $region22: #{tpu_custom_call.1} parent=19 // pred_check_branch
          %122 = sbr.rel (%p120) target = $region24
        $region23: #{tpu_custom_call.1} parent=19 // pred_region
          %s123 = sand.u32 %s46, 1
          %s124 = scalar_lea.sflag [#allocation6], %s123
          %s125 = sand.u32 %s46, 1
          %s126 = smul.addr %s125, 64
          %s127 = scalar_lea.vmem [#allocation5], %s126
          %s129 = ssub.s32 1024, 1024
          %130 = vsyncadd %s124, %s129
          %s131 = smul.addr %s15, 64
          %s132 = scalar_lea.hbm %s1, %s131
          %s133 = sshll.u32 %s127, 4
          %s134 = int_to_ptr.vmem [resolvable:$true] %s133
          %139 = dma.hbm_to_vmem [thread:$0]  %s132, 1024, %s134, %s124, 128, 64, 4
        $region24: #{tpu_custom_call.1} parent=19 // pred_fallthru
          _
      $region20: #{tpu_custom_call.1} parent=5 // pred_fallthru
        _
      %p140 = scmp.le.s32.totalorder 1, %s15
      %p141 = scmp.lt.s32.totalorder %s15, 3
      %p142 = pnand %p140, %p141
      %p143 = pneg %p142
      // Predicated region
      $region25: #{tpu_custom_call.1} parent=5 // pred_check
        _
      $region26: #{tpu_custom_call.1} parent=5 // pred_check_branch
        %145 = sbr.rel (%p142) target = $region28
      $region27: #{tpu_custom_call.1} parent=5 // pred_region
        %s146 = ssub.s32 %s15, 1
        // Predicated region
        $region29: #{tpu_custom_call.1} parent=27 // pred_check
          %p147 = pneg %p36
        $region30: #{tpu_custom_call.1} parent=27 // pred_check_branch
          %149 = sbr.rel (%p147) target = $region32
        $region31: #{tpu_custom_call.1} parent=27 // pred_region
          %150 = dma.done [#allocation3], 128
        $region32: #{tpu_custom_call.1} parent=27 // pred_fallthru
          _
        %s151 = sand.u32 %s49, 1
        %s152 = scalar_lea.sflag [#allocation6], %s151
        %s153 = sand.u32 %s49, 1
        %s154 = smul.addr %s153, 64
        %s155 = scalar_lea.vmem [#allocation5], %s154
        // Predicated region
        $region33: #{tpu_custom_call.1} parent=27 // pred_check
          %p156 = pneg %p62
        $region34: #{tpu_custom_call.1} parent=27 // pred_check_branch
          %158 = sbr.rel (%p156) target = $region36
        $region35: #{tpu_custom_call.1} parent=27 // pred_region
          %159 = dma.done %s152, 1024
        $region36: #{tpu_custom_call.1} parent=27 // pred_fallthru
          _
        %p160 = pneg %p36
        %p161 = pneg %p33
        %s162 = sand.u32 %s49, 1
        %s163 = scalar_lea.sflag [#allocation6], %s162
        %s164 = sand.u32 %s49, 1
        %s165 = smul.addr %s164, 64
        %s166 = scalar_lea.vmem [#allocation5], %s165
        %p167 = pneg %p62
        %p168 = pneg %p59
        %p169 = pneg %p88
        %p170 = pneg %p85
        %s171 = sand.u32 %s75, 1
        %s172 = scalar_lea.sflag [#allocation4], %s171
        %s173 = sand.u32 %s75, 1
        %s174 = smul.addr %s173, 16
        %s175 = scalar_lea.vmem [#allocation7], %s174
        %v177 = vld [vmem:[#allocation2] sm:$0xf]
        %v178 = vld [vmem:[#allocation2 + $0x4] sm:$0xf]
        %v179 = vld [vmem:[%s155] sm:$0xf]
        %v180 = vld [vmem:[%s155 + $0x4] sm:$0xf]
        %v181 = vld [vmem:[%s155 + $0x8] sm:$0xf]
        %v182 = vld [vmem:[%s155 + $0xc] sm:$0xf]
        %v183 = vld [vmem:[%s155 + $0x10] sm:$0xf]
        %v184 = vld [vmem:[%s155 + $0x14] sm:$0xf]
        %v185 = vld [vmem:[%s155 + $0x18] sm:$0xf]
        %v186 = vld [vmem:[%s155 + $0x1c] sm:$0xf]
        %v187 = vld [vmem:[%s155 + $0x20] sm:$0xf]
        %v188 = vld [vmem:[%s155 + $0x24] sm:$0xf]
        %v189 = vld [vmem:[%s155 + $0x28] sm:$0xf]
        %v190 = vld [vmem:[%s155 + $0x2c] sm:$0xf]
        %v191 = vld [vmem:[%s155 + $0x30] sm:$0xf]
        %v192 = vld [vmem:[%s155 + $0x34] sm:$0xf]
        %v193 = vld [vmem:[%s155 + $0x38] sm:$0xf]
        %v194 = vld [vmem:[%s155 + $0x3c] sm:$0xf]
        %v197 = vunpack.c.l.b16 %v177
        %v198 = vunpack.c.l.b16 %v178
        %v199 = vpack.c.b16 %v198, %v197
        %v217 = vunpack.c.l.b16 %v179
        %v218 = vunpack.c.l.b16 %v180
        %v219 = vunpack.c.l.b16 %v181
        %v220 = vunpack.c.l.b16 %v182
        %v221 = vunpack.c.l.b16 %v183
        %v222 = vunpack.c.l.b16 %v184
        %v223 = vunpack.c.l.b16 %v185
        %v224 = vunpack.c.l.b16 %v186
        %v225 = vunpack.c.l.b16 %v187
        %v226 = vunpack.c.l.b16 %v188
        %v227 = vunpack.c.l.b16 %v189
        %v228 = vunpack.c.l.b16 %v190
        %v229 = vunpack.c.l.b16 %v191
        %v230 = vunpack.c.l.b16 %v192
        %v231 = vunpack.c.l.b16 %v193
        %v232 = vunpack.c.l.b16 %v194
        %v233 = vpack.c.b16 %v218, %v217
        %v234 = vpack.c.b16 %v220, %v219
        %v235 = vpack.c.b16 %v222, %v221
        %v236 = vpack.c.b16 %v224, %v223
        %v237 = vpack.c.b16 %v226, %v225
        %v238 = vpack.c.b16 %v228, %v227
        %v239 = vpack.c.b16 %v230, %v229
        %v240 = vpack.c.b16 %v232, %v231
        %249 = vmatprep.subr.bf16.mxu0 0
        %250 = vmatpush1.bf16.msra.mxu0 %v240
        %251 = vmatprep.subr.bf16.mxu0 0
        %252 = vmatpush1.bf16.msra.mxu0 %v239
        %253 = vmatprep.subr.bf16.mxu0 0
        %254 = vmatpush1.bf16.msra.mxu0 %v238
        %255 = vmatprep.subr.bf16.mxu0 0
        %256 = vmatpush1.bf16.msra.mxu0 %v237
        %257 = vmatprep.subr.bf16.mxu0 0
        %258 = vmatpush1.bf16.msra.mxu0 %v236
        %259 = vmatprep.subr.bf16.mxu0 0
        %260 = vmatpush1.bf16.msra.mxu0 %v235
        %261 = vmatprep.subr.bf16.mxu0 0
        %262 = vmatpush1.bf16.msra.mxu0 %v234
        %263 = vmatprep.subr.bf16.mxu0 0
        %264 = vmatpush1.bf16.msra.mxu0 %v233
        %265 = vmatprep.subr.bf16.mxu0 0
        %266 = vmatpush2.bf16.msra.mxu0 0
        %267 = vmatprep.subr.bf16.mxu0 0
        %268 = vmatpush2.bf16.msra.mxu0 0
        %269 = vmatprep.subr.bf16.mxu0 0
        %270 = vmatpush2.bf16.msra.mxu0 0
        %271 = vmatprep.subr.bf16.mxu0 0
        %272 = vmatpush2.bf16.msra.mxu0 0
        %273 = vmatprep.subr.bf16.mxu0 0
        %274 = vmatpush2.bf16.msra.mxu0 0
        %275 = vmatprep.subr.bf16.mxu0 0
        %276 = vmatpush2.bf16.msra.mxu0 0
        %277 = vmatprep.subr.bf16.mxu0 0
        %278 = vmatpush2.bf16.msra.mxu0 0
        %279 = vmatprep.subr.bf16.mxu0 0
        %280 = vmatpush2.bf16.msra.mxu0 0
        %281 = vmatprep.mubr.bf16.mxu0 0
        %282 = vmatmul.mubr.bf16.gmra.mxu0 %v199
        %v283 = vpop.f32.mrf.mxu0
        %v284 = vadd.f32 0.0, %v283
        %v285 = vpop.f32.mrf.mxu0
        %v286 = vpop.f32.mrf.mxu0
        %v287 = vadd.f32 0.0, %v286
        %v288 = vpop.f32.mrf.mxu0
        %289 = vdwg.mxu0
        %290 = vst [vmem:[%s175] sm:$0xff] %v284
        %291 = vst [vmem:[%s175 + $0x8] sm:$0xff] %v287
        %s292 = sand.u32 %s75, 1
        %s293 = scalar_lea.sflag [#allocation4], %s292
        %s294 = sand.u32 %s75, 1
        %s295 = smul.addr %s294, 16
        %s296 = scalar_lea.vmem [#allocation7], %s295
        // Predicated region
        $region37: #{tpu_custom_call.1} parent=27 // pred_check
          %p297 = pneg %p85
        $region38: #{tpu_custom_call.1} parent=27 // pred_check_branch
          %299 = sbr.rel (%p297) target = $region40
        $region39: #{tpu_custom_call.1} parent=27 // pred_region
          %s301 = ssub.s32 256, 256
          %302 = vsyncadd %s293, %s301
          %s303 = smul.addr %s20, 128
          %s304 = scalar_lea.hbm %s2, %s303
          %s305 = sshll.u32 %s296, 4
          %s306 = int_to_ptr.vmem [resolvable:$true] %s305
          %311 = dma.vmem_to_hbm [thread:$0]  %s306, 256, %s304, %s293, 128, 256, 8
        $region40: #{tpu_custom_call.1} parent=27 // pred_fallthru
          _
      $region28: #{tpu_custom_call.1} parent=5 // pred_fallthru
        _
      %p312 = scmp.le.s32.totalorder 2, %s15
      // Predicated region
      $region41: #{tpu_custom_call.1} parent=5 // pred_check
        %p313 = pneg %p312
      $region42: #{tpu_custom_call.1} parent=5 // pred_check_branch
        %315 = sbr.rel (%p313) target = $region44
      $region43: #{tpu_custom_call.1} parent=5 // pred_region
        %s316 = ssub.s32 %s15, 2
        // Predicated region
        $region45: #{tpu_custom_call.1} parent=43 // pred_check
          %p317 = pneg %p91
        $region46: #{tpu_custom_call.1} parent=43 // pred_check_branch
          %319 = sbr.rel (%p317) target = $region48
        $region47: #{tpu_custom_call.1} parent=43 // pred_region
          %s320 = sand.u32 %s76, 1
          %s321 = scalar_lea.sflag [#allocation4], %s320
          %s322 = sand.u32 %s76, 1
          %s323 = smul.addr %s322, 16
          %s324 = scalar_lea.vmem [#allocation7], %s323
          %325 = dma.done %s321, 256
        $region48: #{tpu_custom_call.1} parent=43 // pred_fallthru
          _
      $region44: #{tpu_custom_call.1} parent=5 // pred_fallthru
        _
    $region6: #{tpu_custom_call.1} parent=1 // loop_footer
      %s19 = sadd.s32 1, %s15
    $region7: #{tpu_custom_call.1} parent=1 // loop_footer_branch
      %14 = sbr.rel target = $region3
    $region8: #{tpu_custom_call.1} parent=1 // loop_exit
      _
    %326 = vsyncpa [#allocation3], 1
    %s327 = scalar_lea.sflag [#allocation3], 1
    %328 = vsyncpa %s327, 1
    %329 = vsyncpa [#allocation6], 1
    %s330 = scalar_lea.sflag [#allocation6], 1
    %331 = vsyncpa %s330, 1
    %332 = vsyncpa [#allocation4], 1
    %s333 = scalar_lea.sflag [#allocation4], 1
    %334 = vsyncpa %s333, 1

</llo_original>
